<compile_context>
chip_gen: v5e
topology: v5e:2x2
jax: 0.10.0
libtpu: 0.0.40
codegen_flags: <defaults>
</compile_context>

<pallas_src>
import functools

import jax
import jax.numpy as jnp
import numpy as np
from jax.experimental import pallas as pl
from jax.experimental.pallas import tpu as pltpu

_SCALE = 10.0 / np.log(10.0)  # matches self.scale = 10 / np.log(10)
_EPS = 1e-8
# Y-channel conversion coefficients (self.coef), reshape (1, 3, 1, 1) in torch.
_Y_COEF = np.array([65.481, 128.553, 24.966], dtype=np.float32)


def _psnr_kernel(pred_ref, targ_ref, out_ref, acc_ref, *,
                 toy, rc, r_total, nk, nk2, split_off, overlap, has_tail):
    s = pl.program_id(1)       # reduction-split index (v7x: one per TensorCore)
    kk = pl.program_id(2)      # chunk index within this split
    k_g = s * split_off + kk   # global chunk index (end-aligned second split)

    @pl.when(kk == 0)
    def _():
        acc_ref[...] = jnp.zeros_like(acc_ref)

    if toy:
        # y_p - y_t = sum_c (coef_c/255) * (p_c - t_c); +16 cancels, /255 folds
        # into the coefficients. Channel slices taken directly on the Ref.
        w0, w1, w2 = (float(x) / 255.0 for x in _Y_COEF)
        diff = (w0 * (pred_ref[:, 0].astype(jnp.float32) - targ_ref[:, 0].astype(jnp.float32))
                + w1 * (pred_ref[:, 1].astype(jnp.float32) - targ_ref[:, 1].astype(jnp.float32))
                + w2 * (pred_ref[:, 2].astype(jnp.float32) - targ_ref[:, 2].astype(jnp.float32)))
    else:
        # block is (tb, rc, 128)
        diff = pred_ref[...].astype(jnp.float32) - targ_ref[...].astype(jnp.float32)

    def accum_unmasked():
        # Per-sample, per-lane partial sum of squared error (sublane reduce
        # only; the cross-lane reduce happens once per split at finalize).
        acc_ref[...] += jnp.sum(diff * diff, axis=1)      # (tb, 128)

    if overlap:
        # nk odd with 2 splits: the two splits share one chunk; split 1 skips it.
        not_dup = jnp.logical_or(s == 0, kk != 0)

    if has_tail:
        # Mask only on the globally-last (partial) chunk; every other chunk
        # accumulates without the iota/compare/where overhead.
        main_cond = k_g < nk - 1
        if overlap:
            main_cond = jnp.logical_and(main_cond, not_dup)
        pl.when(main_cond)(accum_unmasked)

        @pl.when(k_g == nk - 1)
        def _():
            row = (nk - 1) * rc + jax.lax.broadcasted_iota(jnp.int32, diff.shape, 1)
            d = jnp.where(row < r_total, diff, 0.0)
            acc_ref[...] += jnp.sum(d * d, axis=1)
    else:
        if overlap:
            pl.when(not_dup)(accum_unmasked)
        else:
            accum_unmasked()

    @pl.when(kk == nk2 - 1)
    def _():
        ssd = jnp.sum(acc_ref[...], axis=1, keepdims=True)          # (tb, 1)
        out_ref[...] = jnp.broadcast_to(ssd, out_ref.shape)         # lane-dense store


def psnr_loss(pred, target, *, loss_weight=1.0, toY=False):
    """Equivalent of PSNRLoss(loss_weight, reduction='mean', toY).forward(pred, target)."""
    assert pred.ndim == 4 and target.ndim == 4
    assert pred.shape == target.shape
    n, c, h, w = pred.shape

    if toY:
        assert c == 3, "toY requires 3-channel (RGB) input"
        m = h * w
        # TODO(synk): pad + mask the lane axis when H*W (or C*H*W) is not a multiple of 128.
        assert m % 128 == 0, "H*W must be a multiple of 128 for this kernel"
        r = m // 128
        pred_in = pred.reshape(n, 3, r, 128)          # native dtype, metadata-only reshape
        targ_in = target.reshape(n, 3, r, 128)
        ch = 3
    else:
        m = c * h * w
        assert m % 128 == 0, "C*H*W must be a multiple of 128 for this kernel"
        r = m // 128
        pred_in = pred.reshape(n, r, 128)
        targ_in = target.reshape(n, r, 128)
        ch = 1

    itemsize = np.dtype(pred.dtype).itemsize
    # ~2 MiB per input block (4096 f32 / 8192 bf16 sublanes; /3 for toY).
    # 2 inputs x 2 pipeline buffers ~= 8 MiB, far under the explicit 32 MiB
    # VMEM limit on every generation, while amortizing the ~0.35us/step cost.
    block_bytes = 2 * 1024 * 1024
    max_sub = max(8, block_bytes // (128 * itemsize))

    sub_per_sample = ch * r
    if sub_per_sample <= max_sub:
        rc, nk = r, 1                                  # whole sample in one chunk
        tb = max(1, min(n, max_sub // sub_per_sample)) # batch small samples per step
    else:
        tb = 1
        rc = min(r, max(8, (max_sub // ch) // 8 * 8))  # chunk the per-sample reduction
        nk = -(-r // rc)
    bt = -(-n // tb)

    # v7x: when the batch axis offers no parallelism (n == 1, multi-chunk),
    # split the reduction into 2 partial sums (one output row per split) so
    # both TensorCores get work; partials are combined below before the log.
    ns = 2 if (bt == 1 and nk >= 2) else 1
    nk2 = -(-nk // ns)
    split_off = nk - nk2               # chunk offset of split 1 (end-aligned)
    overlap = ns * nk2 > nk            # nk odd: the two splits share one chunk
    has_tail = (r % rc) != 0

    if toY:
        blk = (tb, 3, rc, 128)
        imap = lambda b, s, kk: (b, 0, s * split_off + kk, 0)
    else:
        blk = (tb, rc, 128)
        imap = lambda b, s, kk: (b, s * split_off + kk, 0)

    kernel = functools.partial(
        _psnr_kernel, toy=bool(toY), rc=rc, r_total=r, nk=nk, nk2=nk2,
        split_off=split_off, overlap=overlap, has_tail=has_tail)

    total_elems = int(np.prod(pred_in.shape))
    cost = pl.CostEstimate(
        flops=(8 if toY else 3) * total_elems,
        transcendentals=0,
        bytes_accessed=2 * total_elems * itemsize + ns * bt * tb * 128 * 4)

    out = pl.pallas_call(
        kernel,
        out_shape=jax.ShapeDtypeStruct((ns, bt, tb, 128), jnp.float32),
        grid_spec=pltpu.PrefetchScalarGridSpec(
            num_scalar_prefetch=0,
            grid=(bt, ns, nk2),                        # reduction (chunk) axis last
            in_specs=[pl.BlockSpec(blk, imap), pl.BlockSpec(blk, imap)],
            # Full tb block dim => (8,128) rule holds for any n (no tb%8 hazard).
            out_specs=pl.BlockSpec((1, 1, tb, 128), lambda b, s, kk: (s, b, 0, 0)),
            scratch_shapes=[pltpu.VMEM((tb, 128), jnp.float32)],
        ),
        compiler_params=pltpu.CompilerParams(
            # Batch + split axes shard across TensorCores (v7x megacore); each
            # (b, s) block owns its output row, the chunk reduction is sequential.
            dimension_semantics=("parallel", "parallel", "arbitrary"),
            vmem_limit_bytes=32 * 1024 * 1024,
        ),
        cost_estimate=cost,
    )(pred_in, targ_in)

    # Per-sample SSD: slice away batch-padding rows, combine split partials,
    # then do the tiny /m, log(+eps) and mean finalize in the wrapper.
    ssd = out.reshape(ns, bt * tb, 128)[:, :n, 0].sum(axis=0)      # (n,)
    log_terms = jnp.log(ssd * jnp.float32(1.0 / m) + jnp.float32(_EPS))
    return -(jnp.float32(loss_weight) * jnp.float32(_SCALE) * jnp.mean(log_terms))


def _reference(pred, target, *, loss_weight=1.0, toY=False):
    pred = jnp.asarray(pred, jnp.float32)
    target = jnp.asarray(target, jnp.float32)
    if toY:
        coef = jnp.asarray(_Y_COEF).reshape(1, 3, 1, 1)
        pred = (pred * coef).sum(axis=1, keepdims=True) + 16.0
        target = (target * coef).sum(axis=1, keepdims=True) + 16.0
        pred, target = pred / 255.0, target / 255.0
    mse = jnp.mean((pred - target) ** 2, axis=(1, 2, 3))
    return -(loss_weight * _SCALE * jnp.mean(jnp.log(mse + _EPS)))


if __name__ == "__main__":
    key = jax.random.PRNGKey(0)
    k1, k2, k3, k4, k5, k6 = jax.random.split(key, 6)

    # 1) Default path (toY=False), small NCHW, f32.
    pred = jax.random.uniform(k1, (2, 4, 16, 16), dtype=jnp.float32)
    target = jax.random.uniform(k2, (2, 4, 16, 16), dtype=jnp.float32)
    loss = jax.block_until_ready(psnr_loss(pred, target, loss_weight=1.0, toY=False))
    ref = _reference(pred, target, loss_weight=1.0, toY=False)
    np.testing.assert_allclose(np.asarray(loss), np.asarray(ref), rtol=1e-5, atol=1e-5)

    # 2) Fused toY path (3-channel RGB input).
    pred_y = jax.random.uniform(k3, (2, 3, 16, 16), dtype=jnp.float32)
    target_y = jax.random.uniform(k4, (2, 3, 16, 16), dtype=jnp.float32)
    loss_y = jax.block_until_ready(psnr_loss(pred_y, target_y, loss_weight=1.0, toY=True))
    ref_y = _reference(pred_y, target_y, loss_weight=1.0, toY=True)
    np.testing.assert_allclose(np.asarray(loss_y), np.asarray(ref_y), rtol=1e-5, atol=1e-5)

    # 3) Native bf16 inputs (kernel casts per tile; halves HBM traffic).
    pred_b = pred.astype(jnp.bfloat16)
    target_b = target.astype(jnp.bfloat16)
    loss_b = jax.block_until_ready(psnr_loss(pred_b, target_b, loss_weight=1.0, toY=False))
    ref_b = _reference(pred_b, target_b, loss_weight=1.0, toY=False)
    np.testing.assert_allclose(np.asarray(loss_b), np.asarray(ref_b), rtol=1e-5, atol=1e-5)

    # 4) Single-sample, multi-chunk case exercising the chunked reduction,
    #    the partial-tail mask and the 2-way reduction split (odd chunk count).
    pred_l = jax.random.uniform(k5, (1, 4, 450, 640), dtype=jnp.float32)
    target_l = jax.random.uniform(k6, (1, 4, 450, 640), dtype=jnp.float32)
    loss_l = jax.block_until_ready(psnr_loss(pred_l, target_l, loss_weight=1.0, toY=False))
    ref_l = _reference(pred_l, target_l, loss_weight=1.0, toY=False)
    np.testing.assert_allclose(np.asarray(loss_l), np.asarray(ref_l), rtol=5e-5, atol=1e-5)

    print("KERNEL_OK")
</pallas_src>

<mosaic_0001>
module attributes {stable_mosaic.version = 11 : i64} {
  func.func @_psnr_kernel(%arg0: i32, %arg1: i32, %arg2: i32, %arg3: memref<2x8x128xf32, #tpu.memory_space<vmem>>, %arg4: memref<2x8x128xf32, #tpu.memory_space<vmem>>, %arg5: memref<1x1x2x128xf32, #tpu.memory_space<vmem>>, %arg6: memref<2x128xf32, #tpu.memory_space<vmem>>) attributes {dimension_semantics = [#tpu.dimension_semantics<parallel>, #tpu.dimension_semantics<parallel>, #tpu.dimension_semantics<arbitrary>], iteration_bounds = array<i64: 1, 1, 1>, scalar_prefetch = 0 : i64, scratch_operands = 1 : i64, tpu.core_type = #tpu.core_type<tc>, window_params = [{transform_indices = @transform_0, window_bounds = array<i64: 2, 8, 128>}, {transform_indices = @transform_1, window_bounds = array<i64: 2, 8, 128>}, {transform_indices = @transform_2, window_bounds = array<i64: 1, 1, 2, 128>}]} {
    %c0_i32 = arith.constant 0 : i32
    %0 = arith.cmpi eq, %arg2, %c0_i32 : i32
    %1 = arith.extui %0 : i1 to i32
    %c0_i32_0 = arith.constant 0 : i32
    %2 = arith.cmpi ne, %1, %c0_i32_0 : i32
    scf.if %2 {
      %cst_12 = arith.constant 0.000000e+00 : f32
      %14 = vector.broadcast %cst_12 : f32 to vector<2x128xf32>
      %c0_13 = arith.constant 0 : index
      %c0_14 = arith.constant 0 : index
      %15 = vector.load %arg6[%c0_13, %c0_14] : memref<2x128xf32, #tpu.memory_space<vmem>>, vector<2x128xf32>
      tpu.vector_store %arg6[%c0_13, %c0_14], %14 {strides = array<i32>} : memref<2x128xf32, #tpu.memory_space<vmem>>, vector<2x128xf32>,
    } else {
    }
    %c0 = arith.constant 0 : index
    %c0_1 = arith.constant 0 : index
    %c0_2 = arith.constant 0 : index
    %3 = vector.load %arg3[%c0, %c0_1, %c0_2] : memref<2x8x128xf32, #tpu.memory_space<vmem>>, vector<2x8x128xf32>
    %c0_3 = arith.constant 0 : index
    %c0_4 = arith.constant 0 : index
    %c0_5 = arith.constant 0 : index
    %4 = vector.load %arg4[%c0_3, %c0_4, %c0_5] : memref<2x8x128xf32, #tpu.memory_space<vmem>>, vector<2x8x128xf32>
    %5 = arith.subf %3, %4 : vector<2x8x128xf32>
    %c0_6 = arith.constant 0 : index
    %c0_7 = arith.constant 0 : index
    %6 = vector.load %arg6[%c0_6, %c0_7] : memref<2x128xf32, #tpu.memory_space<vmem>>, vector<2x128xf32>
    %7 = arith.mulf %5, %5 : vector<2x8x128xf32>
    %cst = arith.constant dense<0.000000e+00> : vector<2x128xf32>
    %8 = vector.multi_reduction <add>, %7, %cst [1] : vector<2x8x128xf32> to vector<2x128xf32>
    %9 = arith.addf %6, %8 : vector<2x128xf32>
    %c0_8 = arith.constant 0 : index
    %c0_9 = arith.constant 0 : index
    %10 = vector.load %arg6[%c0_8, %c0_9] : memref<2x128xf32, #tpu.memory_space<vmem>>, vector<2x128xf32>
    tpu.vector_store %arg6[%c0_8, %c0_9], %9 {strides = array<i32>} : memref<2x128xf32, #tpu.memory_space<vmem>>, vector<2x128xf32>,
    %c0_i32_10 = arith.constant 0 : i32
    %11 = arith.cmpi eq, %arg2, %c0_i32_10 : i32
    %12 = arith.extui %11 : i1 to i32
    %c0_i32_11 = arith.constant 0 : i32
    %13 = arith.cmpi ne, %12, %c0_i32_11 : i32
    scf.if %13 {
      %c0_12 = arith.constant 0 : index
      %c0_13 = arith.constant 0 : index
      %14 = vector.load %arg6[%c0_12, %c0_13] : memref<2x128xf32, #tpu.memory_space<vmem>>, vector<2x128xf32>
      %cst_14 = arith.constant dense<0.000000e+00> : vector<2xf32>
      %15 = vector.multi_reduction <add>, %14, %cst_14 [1] : vector<2x128xf32> to vector<2xf32>
      %16 = vector.shape_cast %15 : vector<2xf32> to vector<2x1xf32>
      %17 = vector.shape_cast %16 : vector<2x1xf32> to vector<1x1x2x1xf32>
      %18 = vector.broadcast %17 : vector<1x1x2x1xf32> to vector<1x1x2x128xf32>
      %c0_15 = arith.constant 0 : index
      %c0_16 = arith.constant 0 : index
      %c0_17 = arith.constant 0 : index
      %c0_18 = arith.constant 0 : index
      %19 = vector.load %arg5[%c0_15, %c0_16, %c0_17, %c0_18] : memref<1x1x2x128xf32, #tpu.memory_space<vmem>>, vector<1x1x2x128xf32>
      tpu.vector_store %arg5[%c0_15, %c0_16, %c0_17, %c0_18], %18 {strides = array<i32>} : memref<1x1x2x128xf32, #tpu.memory_space<vmem>>, vector<1x1x2x128xf32>,
    } else {
    }
    return
  }
  func.func @transform_0(%arg0: i32, %arg1: i32, %arg2: i32) -> (i32, i32, i32) {
    %c0_i32 = arith.constant 0 : i32
    %0 = arith.muli %arg1, %c0_i32 : i32
    %1 = arith.addi %0, %arg2 : i32
    %c0_i32_0 = arith.constant 0 : i32
    %c0_i32_1 = arith.constant 0 : i32
    return %arg0, %1, %c0_i32_0 : i32, i32, i32
  }
  func.func @transform_1(%arg0: i32, %arg1: i32, %arg2: i32) -> (i32, i32, i32) {
    %c0_i32 = arith.constant 0 : i32
    %0 = arith.muli %arg1, %c0_i32 : i32
    %1 = arith.addi %0, %arg2 : i32
    %c0_i32_0 = arith.constant 0 : i32
    %c0_i32_1 = arith.constant 0 : i32
    return %arg0, %1, %c0_i32_0 : i32, i32, i32
  }
  func.func @transform_2(%arg0: i32, %arg1: i32, %arg2: i32) -> (i32, i32, i32, i32) {
    %c0_i32 = arith.constant 0 : i32
    %c0_i32_0 = arith.constant 0 : i32
    %c0_i32_1 = arith.constant 0 : i32
    return %arg1, %arg0, %c0_i32, %c0_i32_0 : i32, i32, i32, i32
  }
}

</mosaic_0001>

<llo_original>
// kernel: tpu_custom_call.1
$region0: #{tpu_custom_call.1}
  #allocation0 [shape = 'u32[]', space=smem, size = 0x4, offset = 0x4, fixed_abs, tag = 'smem constant byte address 0x4 - core index']
  #allocation1 [shape = 'u32[72,128]{1,0:T(1,128)}', space=vmem, size = 0x9000, scoped, tag = 'internal scratch']
  #allocation2 [shape = 'f32[2,128]{1,0:T(2,128)}', space=vmem, size = 0x400, scoped, tag = 'scratch operand']
  %s0 = inlined_call_operand.hbm [shape: f32[2,8,128], index: 0, kind: input, shape index: {}]
  %s1 = inlined_call_operand.hbm [shape: f32[2,8,128], index: 1, kind: input, shape index: {}]
  %s2 = inlined_call_operand.hbm [shape: f32[1,1,2,128], index: 2, kind: output, shape index: {}]
  %s3 = sld [smem:[#allocation0]]
  $region34: #{tpu_custom_call.1} parent=0
    _
  %s5 = ssub.s32 1, %s3
  %s6 = scalar_select 0, %s5, %s3
  $region1: #{tpu_custom_call.1} parent=0
    #allocation3 [shape = 'u8[8192]{0}', space=vmem, size = 0x2000, scoped, tag = 'input window, operand 0, single buffered']
    #allocation4 [shape = 's32[1]{0}', space=sflag, size = 0x4, scoped, tag = 'scoped memory for tpu_custom_call.1']
    #allocation5 [shape = 's32[1]{0}', space=sflag, size = 0x4, scoped, tag = 'scoped memory for tpu_custom_call.1']
    #allocation6 [shape = 'u8[8192]{0}', space=vmem, size = 0x2000, scoped, tag = 'input window, operand 1, single buffered']
    #allocation7 [shape = 's32[1]{0}', space=sflag, size = 0x4, scoped, tag = 'scoped memory for tpu_custom_call.1']
    #allocation8 [shape = 'u8[1024]{0}', space=vmem, size = 0x400, scoped, tag = 'output window, operand 0, single buffered']
    %7 = vsyncpa [#allocation4], 0
    %8 = vsyncpa [#allocation7], 0
    %9 = vsyncpa [#allocation5], 0
    // Predicated region
    $region2: #{tpu_custom_call.1} parent=1 // pred_check
      _
    $region3: #{tpu_custom_call.1} parent=1 // pred_check_branch
      %11 = sbr.rel (0) target = $region5
    $region4: #{tpu_custom_call.1} parent=1 // pred_region
      %13 = vsyncadd [#allocation4], 0
      %s14 = sshll.u32 %s0, 4
      %s15 = int_to_ptr.hbm [resolvable:$true] %s14
      %s16 = sshll.u32 [#allocation3], 4
      %s17 = int_to_ptr.vmem [resolvable:$true] %s16
      %22 = dma.hbm_to_vmem [thread:$0]  %s15, 256, %s17, [#allocation4], 128, 128, 8
    $region5: #{tpu_custom_call.1} parent=1 // pred_fallthru
      _
    // Predicated region
    $region6: #{tpu_custom_call.1} parent=1 // pred_check
      _
    $region7: #{tpu_custom_call.1} parent=1 // pred_check_branch
      %24 = sbr.rel (0) target = $region9
    $region8: #{tpu_custom_call.1} parent=1 // pred_region
      %26 = vsyncadd [#allocation7], 0
      %s27 = sshll.u32 %s1, 4
      %s28 = int_to_ptr.hbm [resolvable:$true] %s27
      %s29 = sshll.u32 [#allocation6], 4
      %s30 = int_to_ptr.vmem [resolvable:$true] %s29
      %35 = dma.hbm_to_vmem [thread:$0]  %s28, 256, %s30, [#allocation7], 128, 128, 8
    $region9: #{tpu_custom_call.1} parent=1 // pred_fallthru
      _
    // Predicated region
    $region10: #{tpu_custom_call.1} parent=1 // pred_check
      _
    $region11: #{tpu_custom_call.1} parent=1 // pred_check_branch
      %37 = sbr.rel (0) target = $region13
    $region12: #{tpu_custom_call.1} parent=1 // pred_region
      %39 = dma.done [#allocation4], 256
    $region13: #{tpu_custom_call.1} parent=1 // pred_fallthru
      _
    // Predicated region
    $region14: #{tpu_custom_call.1} parent=1 // pred_check
      _
    $region15: #{tpu_custom_call.1} parent=1 // pred_check_branch
      %41 = sbr.rel (0) target = $region17
    $region16: #{tpu_custom_call.1} parent=1 // pred_region
      %43 = dma.done [#allocation7], 256
    $region17: #{tpu_custom_call.1} parent=1 // pred_fallthru
      _
    %p44 = scmp.eq.s32.totalorder 0, 0
    // Predicated region
    $region18: #{tpu_custom_call.1} parent=1 // pred_check
      %p45 = pneg %p44
    $region19: #{tpu_custom_call.1} parent=1 // pred_check_branch
      %47 = sbr.rel (%p45) target = $region21
    $region20: #{tpu_custom_call.1} parent=1 // pred_region
      %48 = vst [vmem:[#allocation2] sm:$0x3] 0.0
    $region21: #{tpu_custom_call.1} parent=1 // pred_fallthru
      _
    %v49 = vld [vmem:[#allocation3] sm:$0xff]
    %v50 = vld [vmem:[#allocation3 + $0x8] sm:$0xff]
    %v51 = vld [vmem:[#allocation6] sm:$0xff]
    %v52 = vld [vmem:[#allocation6 + $0x8] sm:$0xff]
    %v53 = vsub.f32 %v49, %v51
    %v54 = vsub.f32 %v50, %v52
    %v55 = vld [vmem:[#allocation2] sm:$0x3]
    %v56 = vmul.f32 %v53, %v53
    %v57 = vmul.f32 %v54, %v54
    %v58 = vrot.slane %v56, 4
    %v59 = vadd.f32 %v56, %v58
    %v60 = vrot.slane %v59, 2
    %v61 = vadd.f32 %v59, %v60
    %v62 = vrot.slane %v61, 1
    %v63 = vadd.f32 %v61, %v62
    %v64 = vrot.slane %v57, 4
    %v65 = vadd.f32 %v57, %v64
    %v66 = vrot.slane %v65, 2
    %v67 = vadd.f32 %v65, %v66
    %v68 = vrot.slane %v67, 1
    %v69 = vadd.f32 %v67, %v68
    %vm72 = vcmask 1041409
    %v73 = vsel %vm72, %v69, %v63
    %v75 = vadd.f32 %v55, %v73
    %76 = vst [vmem:[#allocation2] sm:$0x3] %v75
    // Predicated region
    $region22: #{tpu_custom_call.1} parent=1 // pred_check
      %p77 = pneg %p44
    $region23: #{tpu_custom_call.1} parent=1 // pred_check_branch
      %79 = sbr.rel (%p77) target = $region25
    $region24: #{tpu_custom_call.1} parent=1 // pred_region
      %v80 = vld [vmem:[#allocation2] sm:$0x3]
      %vm81 = vcmask 1041408
      %v82 = vsel %vm81, %v80, 0.0
      %83 = vadd.xlane.f32.xlu0 %v82
      %v84 = vpop.xlane.xlu0 %83
      %85 = vst [vmem:[#allocation8] sm:$0x3] %v84
    $region25: #{tpu_custom_call.1} parent=1 // pred_fallthru
      _
    // Predicated region
    $region26: #{tpu_custom_call.1} parent=1 // pred_check
      _
    $region27: #{tpu_custom_call.1} parent=1 // pred_check_branch
      %87 = sbr.rel (0) target = $region29
    $region28: #{tpu_custom_call.1} parent=1 // pred_region
      %89 = vsyncadd [#allocation5], 0
      %s91 = sshll.u32 [#allocation8], 4
      %s92 = int_to_ptr.vmem [resolvable:$true] %s91
      %s93 = sshll.u32 %s2, 4
      %s94 = int_to_ptr.hbm [resolvable:$true] %s93
      %96 = dma.vmem_to_hbm [thread:$0]  %s92, 32, %s94, [#allocation5]
    $region29: #{tpu_custom_call.1} parent=1 // pred_fallthru
      _
    // Predicated region
    $region30: #{tpu_custom_call.1} parent=1 // pred_check
      _
    $region31: #{tpu_custom_call.1} parent=1 // pred_check_branch
      %98 = sbr.rel (0) target = $region33
    $region32: #{tpu_custom_call.1} parent=1 // pred_region
      %100 = dma.done [#allocation5], 32
    $region33: #{tpu_custom_call.1} parent=1 // pred_fallthru
      _
    %101 = vsyncpa [#allocation4], 1
    %102 = vsyncpa [#allocation7], 1
    %103 = vsyncpa [#allocation5], 1

</llo_original>
